<compile_context>
chip_gen: v7x
topology: tpu7x:2x2x1
jax: 0.10.0
libtpu: 0.0.40
codegen_flags: <defaults>
</compile_context>

<pallas_src>
import functools

import jax
import jax.numpy as jnp
from jax import lax
from jax.experimental import pallas as pl
from jax.experimental.pallas import tpu as pltpu


def _round_up(x: int, m: int) -> int:
    return (x + m - 1) // m * m


def _choose_tile(dim: int, align: int, max_tile: int) -> int:
    """Largest reasonable tile <= max_tile, multiple of `align`, minimal pad."""
    if dim <= max_tile:
        return _round_up(dim, align)
    n_tiles = -(-dim // max_tile)
    return _round_up(-(-dim // n_tiles), align)


def _vmem_limit_bytes() -> int:
    try:
        cap = int(pltpu.get_tpu_info().vmem_capacity_bytes)
    except Exception:
        cap = 64 * 1024 * 1024  # conservative fallback (v7x per-core size)
    # Leave ~25% headroom for Mosaic internal scratch; cap so v5e/v6e (128 MiB)
    # still keep plenty of slack.
    return min(int(cap * 0.75), 104 * 1024 * 1024)


def _tile_caps(vmem_limit: int):
    """(max_tm, max_tn, max_tk) per generation (bf16 operand tiles)."""
    if vmem_limit >= 72 * 1024 * 1024:       # v5e / v6e: 128 MiB physical VMEM
        return 512, 1024, 2048
    return 512, 512, 1024                    # v7x: 64 MiB physical VMEM


def _cast_pad2d(a, dtype, rows, cols):
    """Cast to `dtype`; zero-pad up to (rows, cols) only if actually needed."""
    a = a.astype(dtype)
    pr, pc = rows - a.shape[0], cols - a.shape[1]
    if pr or pc:
        a = jnp.pad(a, ((0, pr), (0, pc)))
    return a


# --------------------------------------------------------------------------
# Kernels
# --------------------------------------------------------------------------
def _w_eff_kernel(eps, wp_ref, wa_ref, we_ref):
    # Elementwise effective-weight transform.  Math in f32 (tanh -> EUP,
    # mul/add -> VPU); result stored in the bf16 MXU-operand dtype.
    wp = wp_ref[...].astype(jnp.float32)
    wa = wa_ref[...].astype(jnp.float32)
    we_ref[...] = (wp * (1.0 + eps * jnp.tanh(wa))).astype(we_ref.dtype)


def _matmul_bias_kernel(x_ref, w_ref, b_ref, o_ref):
    # y[i, j] = sum_k x[i, k] . w[j, k]  (+ bias at the last K step).
    # o_ref's block index is (i, j) for every k, so the f32 output tile stays
    # resident in VMEM across the K axis and doubles as the accumulator.
    k = pl.program_id(2)

    @pl.when(k == 0)
    def _():
        o_ref[...] = jnp.zeros_like(o_ref)

    o_ref[...] += lax.dot_general(
        x_ref[...], w_ref[...],
        dimension_numbers=(((1,), (1,)), ((), ())),   # contract last dims
        preferred_element_type=jnp.float32)

    @pl.when(k == pl.num_programs(2) - 1)
    def _():
        o_ref[...] += b_ref[...]


def _fused_kernel(eps, mxu_dtype, x_ref, wp_ref, wa_ref, b_ref, o_ref):
    # Single-M-tile path: weights are streamed exactly once, so the effective-
    # weight transform is fused right in front of the MXU feed.
    k = pl.program_id(2)

    @pl.when(k == 0)
    def _():
        o_ref[...] = jnp.zeros_like(o_ref)

    wp = wp_ref[...].astype(jnp.float32)
    wa = wa_ref[...].astype(jnp.float32)
    w_eff = (wp * (1.0 + eps * jnp.tanh(wa))).astype(mxu_dtype)

    o_ref[...] += lax.dot_general(
        x_ref[...], w_eff,
        dimension_numbers=(((1,), (1,)), ((), ())),
        preferred_element_type=jnp.float32)

    @pl.when(k == pl.num_programs(2) - 1)
    def _():
        o_ref[...] += b_ref[...]


# --------------------------------------------------------------------------
# Wrapper
# --------------------------------------------------------------------------
def adversarial_linear(x, primary_weight, adversary_weight, bias, eps=0.01,
                       *, operand_dtype=jnp.bfloat16, precompute_w_eff=None):
    """y = x @ (W_p * (1 + eps*tanh(W_a)))^T + b as Pallas TPU kernels.

    x:                (batch, in_features)
    primary_weight:   (out_features, in_features)
    adversary_weight: (out_features, in_features)
    bias:             (out_features,) or None
    """
    batch, in_features = x.shape
    out_features = primary_weight.shape[0]
    orig_dtype = x.dtype
    eps = float(eps)

    vmem_limit = _vmem_limit_bytes()
    max_tm, max_tn, max_tk = _tile_caps(vmem_limit)

    # bf16 packs two rows per sublane -> tm multiple of 16; lane dims 128.
    tm = _choose_tile(batch, 16, max_tm)
    tn = _choose_tile(out_features, 128, max_tn)
    tk = _choose_tile(in_features, 128, max_tk)

    M = _round_up(batch, tm)
    N = _round_up(out_features, tn)
    K = _round_up(in_features, tk)

    # Stream operands as bf16; pad only when not already tile-aligned.
    # Zero padding is exact for this op (zero x columns / zero weight rows
    # contribute nothing, padded output rows/cols are sliced off).
    xp = _cast_pad2d(x, operand_dtype, M, K)
    wpp = _cast_pad2d(primary_weight, operand_dtype, N, K)
    wap = _cast_pad2d(adversary_weight, operand_dtype, N, K)
    if bias is None:
        bp = jnp.zeros((1, N), jnp.float32)
    else:
        bp = _cast_pad2d(bias.reshape(1, -1), jnp.float32, 1, N)

    grid = (M // tm, N // tn, K // tk)
    if precompute_w_eff is None:
        # When more than one i-tile exists the (i, j, k) grid would re-stream
        # both weight arrays and recompute tanh per i-tile -> precompute once.
        precompute_w_eff = grid[0] > 1

    matmul_params = pltpu.CompilerParams(
        # NOTE(v7x): with >= 2 parallel (i, j) tiles both TensorCores get work.
        dimension_semantics=("parallel", "parallel", "arbitrary"),
        vmem_limit_bytes=vmem_limit)

    if precompute_w_eff:
        w_eff = pl.pallas_call(
            functools.partial(_w_eff_kernel, eps),
            out_shape=jax.ShapeDtypeStruct((N, K), operand_dtype),
            grid_spec=pltpu.PrefetchScalarGridSpec(
                num_scalar_prefetch=0,
                grid=(N // tn, K // tk),
                in_specs=[pl.BlockSpec((tn, tk), lambda j, k: (j, k)),
                          pl.BlockSpec((tn, tk), lambda j, k: (j, k))],
                out_specs=pl.BlockSpec((tn, tk), lambda j, k: (j, k))),
            compiler_params=pltpu.CompilerParams(
                dimension_semantics=("parallel", "parallel"),
                vmem_limit_bytes=vmem_limit),
        )(wpp, wap)

        y_pad = pl.pallas_call(
            _matmul_bias_kernel,
            out_shape=jax.ShapeDtypeStruct((M, N), jnp.float32),
            grid_spec=pltpu.PrefetchScalarGridSpec(
                num_scalar_prefetch=0,
                grid=grid,
                in_specs=[pl.BlockSpec((tm, tk), lambda i, j, k: (i, k)),  # x
                          pl.BlockSpec((tn, tk), lambda i, j, k: (j, k)),  # W_eff
                          pl.BlockSpec((1, tn), lambda i, j, k: (0, j))],  # bias
                out_specs=pl.BlockSpec((tm, tn), lambda i, j, k: (i, j))),
            compiler_params=matmul_params,
        )(xp, w_eff, bp)
    else:
        y_pad = pl.pallas_call(
            functools.partial(_fused_kernel, eps, operand_dtype),
            out_shape=jax.ShapeDtypeStruct((M, N), jnp.float32),
            grid_spec=pltpu.PrefetchScalarGridSpec(
                num_scalar_prefetch=0,
                grid=grid,
                in_specs=[pl.BlockSpec((tm, tk), lambda i, j, k: (i, k)),  # x
                          pl.BlockSpec((tn, tk), lambda i, j, k: (j, k)),  # W_p
                          pl.BlockSpec((tn, tk), lambda i, j, k: (j, k)),  # W_a
                          pl.BlockSpec((1, tn), lambda i, j, k: (0, j))],  # bias
                out_specs=pl.BlockSpec((tm, tn), lambda i, j, k: (i, j))),
            compiler_params=matmul_params,
        )(xp, wpp, wap, bp)

    y = y_pad
    if (M, N) != (batch, out_features):
        y = y[:batch, :out_features]
    return y.astype(orig_dtype)


# --------------------------------------------------------------------------
# Self-test
# --------------------------------------------------------------------------
if __name__ == "__main__":
    batch, in_features, out_features = 8, 32, 16
    eps = 0.01

    key = jax.random.PRNGKey(0)
    kx, kwp, kwa, kb = jax.random.split(key, 4)

    # Deterministic parameter init consistent with the module:
    #   primary_weight: kaiming_uniform (relu) -> bound = sqrt(2)*sqrt(3/fan_in)
    #   adversary_weight: module inits zeros; use reset_adversary()-style
    #                     U(-1, 1) so the tanh path is actually exercised.
    #   bias: U(-1/sqrt(fan_in), 1/sqrt(fan_in))
    fan_in = in_features
    w_bound = (2.0 ** 0.5) * (3.0 / fan_in) ** 0.5
    b_bound = 1.0 / (fan_in ** 0.5)

    x = jax.random.normal(kx, (batch, in_features), dtype=jnp.float32)
    primary_weight = jax.random.uniform(
        kwp, (out_features, in_features), minval=-w_bound, maxval=w_bound,
        dtype=jnp.float32)
    adversary_weight = jax.random.uniform(
        kwa, (out_features, in_features), minval=-1.0, maxval=1.0,
        dtype=jnp.float32)
    bias = jax.random.uniform(
        kb, (out_features,), minval=-b_bound, maxval=b_bound, dtype=jnp.float32)

    # Pure-JAX f32 reference of the forward semantics.
    w_eff_ref = primary_weight * (1.0 + eps * jnp.tanh(adversary_weight))
    y_ref = x @ w_eff_ref.T + bias

    # Exercise both code paths: fused (single i-tile) and precomputed W_eff.
    for pre in (False, True):
        y = adversarial_linear(x, primary_weight, adversary_weight, bias,
                               eps=eps, precompute_w_eff=pre)
        y = jax.block_until_ready(y)
        assert y.shape == (batch, out_features)
        # bf16 MXU operands with f32 accumulation -> ~1e-2 relative accuracy.
        assert jnp.allclose(y, y_ref, atol=5e-2, rtol=5e-2), (
            f"mismatch vs reference (precompute_w_eff={pre})")

    print("KERNEL_OK")
</pallas_src>

<mosaic_0001>
module attributes {stable_mosaic.version = 11 : i64} {
  func.func @_fused_kernel(%arg0: i32, %arg1: i32, %arg2: i32, %arg3: memref<16x128xbf16, #tpu.memory_space<vmem>>, %arg4: memref<128x128xbf16, #tpu.memory_space<vmem>>, %arg5: memref<128x128xbf16, #tpu.memory_space<vmem>>, %arg6: memref<1x128xf32, #tpu.memory_space<vmem>>, %arg7: memref<16x128xf32, #tpu.memory_space<vmem>>) attributes {dimension_semantics = [#tpu.dimension_semantics<parallel>, #tpu.dimension_semantics<parallel>, #tpu.dimension_semantics<arbitrary>], iteration_bounds = array<i64: 1, 1, 1>, scalar_prefetch = 0 : i64, scratch_operands = 0 : i64, tpu.core_type = #tpu.core_type<tc>, window_params = [{transform_indices = @transform_0, window_bounds = array<i64: 16, 128>}, {transform_indices = @transform_1, window_bounds = array<i64: 128, 128>}, {transform_indices = @transform_2, window_bounds = array<i64: 128, 128>}, {transform_indices = @transform_3, window_bounds = array<i64: 1, 128>}, {transform_indices = @transform_4, window_bounds = array<i64: 16, 128>}]} {
    %c0_i32 = arith.constant 0 : i32
    %0 = arith.cmpi eq, %arg2, %c0_i32 : i32
    %1 = arith.extui %0 : i1 to i32
    %c0_i32_0 = arith.constant 0 : i32
    %2 = arith.cmpi ne, %1, %c0_i32_0 : i32
    scf.if %2 {
      %cst_14 = arith.constant 0.000000e+00 : f32
      %22 = vector.broadcast %cst_14 : f32 to vector<16x128xf32>
      %c0_15 = arith.constant 0 : index
      %c0_16 = arith.constant 0 : index
      %23 = vector.load %arg7[%c0_15, %c0_16] : memref<16x128xf32, #tpu.memory_space<vmem>>, vector<16x128xf32>
      tpu.vector_store %arg7[%c0_15, %c0_16], %22 {strides = array<i32>} : memref<16x128xf32, #tpu.memory_space<vmem>>, vector<16x128xf32>,
    } else {
    }
    %c0 = arith.constant 0 : index
    %c0_1 = arith.constant 0 : index
    %3 = vector.load %arg4[%c0, %c0_1] : memref<128x128xbf16, #tpu.memory_space<vmem>>, vector<128x128xbf16>
    %4 = arith.extf %3 : vector<128x128xbf16> to vector<128x128xf32>
    %c0_2 = arith.constant 0 : index
    %c0_3 = arith.constant 0 : index
    %5 = vector.load %arg5[%c0_2, %c0_3] : memref<128x128xbf16, #tpu.memory_space<vmem>>, vector<128x128xbf16>
    %6 = arith.extf %5 : vector<128x128xbf16> to vector<128x128xf32>
    %7 = math.tanh %6 : vector<128x128xf32>
    %cst = arith.constant 0.00999999977 : f32
    %8 = vector.broadcast %cst : f32 to vector<128x128xf32>
    %9 = arith.mulf %8, %7 : vector<128x128xf32>
    %cst_4 = arith.constant 1.000000e+00 : f32
    %10 = vector.broadcast %cst_4 : f32 to vector<128x128xf32>
    %11 = arith.addf %10, %9 : vector<128x128xf32>
    %12 = arith.mulf %4, %11 : vector<128x128xf32>
    %13 = arith.truncf %12 : vector<128x128xf32> to vector<128x128xbf16>
    %c0_5 = arith.constant 0 : index
    %c0_6 = arith.constant 0 : index
    %14 = vector.load %arg7[%c0_5, %c0_6] : memref<16x128xf32, #tpu.memory_space<vmem>>, vector<16x128xf32>
    %c0_7 = arith.constant 0 : index
    %c0_8 = arith.constant 0 : index
    %15 = vector.load %arg3[%c0_7, %c0_8] : memref<16x128xbf16, #tpu.memory_space<vmem>>, vector<16x128xbf16>
    %cst_9 = arith.constant dense<0.000000e+00> : vector<16x128xf32>
    %16 = tpu.matmul %15, %13, %cst_9 {dimension_numbers = #tpu.dot_dimension_numbers<[1], [1], [0], [0], [0, 0, 1, 0], [], []>} : vector<16x128xbf16>, vector<128x128xbf16>, vector<16x128xf32> -> vector<16x128xf32>
    %17 = arith.addf %14, %16 : vector<16x128xf32>
    %c0_10 = arith.constant 0 : index
    %c0_11 = arith.constant 0 : index
    %18 = vector.load %arg7[%c0_10, %c0_11] : memref<16x128xf32, #tpu.memory_space<vmem>>, vector<16x128xf32>
    tpu.vector_store %arg7[%c0_10, %c0_11], %17 {strides = array<i32>} : memref<16x128xf32, #tpu.memory_space<vmem>>, vector<16x128xf32>,
    %c0_i32_12 = arith.constant 0 : i32
    %19 = arith.cmpi eq, %arg2, %c0_i32_12 : i32
    %20 = arith.extui %19 : i1 to i32
    %c0_i32_13 = arith.constant 0 : i32
    %21 = arith.cmpi ne, %20, %c0_i32_13 : i32
    scf.if %21 {
      %c0_14 = arith.constant 0 : index
      %c0_15 = arith.constant 0 : index
      %22 = vector.load %arg7[%c0_14, %c0_15] : memref<16x128xf32, #tpu.memory_space<vmem>>, vector<16x128xf32>
      %c0_16 = arith.constant 0 : index
      %c0_17 = arith.constant 0 : index
      %23 = vector.load %arg6[%c0_16, %c0_17] : memref<1x128xf32, #tpu.memory_space<vmem>>, vector<1x128xf32>
      %24 = vector.broadcast %23 : vector<1x128xf32> to vector<16x128xf32>
      %25 = arith.addf %22, %24 : vector<16x128xf32>
      %c0_18 = arith.constant 0 : index
      %c0_19 = arith.constant 0 : index
      %26 = vector.load %arg7[%c0_18, %c0_19] : memref<16x128xf32, #tpu.memory_space<vmem>>, vector<16x128xf32>
      tpu.vector_store %arg7[%c0_18, %c0_19], %25 {strides = array<i32>} : memref<16x128xf32, #tpu.memory_space<vmem>>, vector<16x128xf32>,
    } else {
    }
    return
  }
  func.func @transform_0(%arg0: i32, %arg1: i32, %arg2: i32) -> (i32, i32) {
    %c0_i32 = arith.constant 0 : i32
    return %arg0, %arg2 : i32, i32
  }
  func.func @transform_1(%arg0: i32, %arg1: i32, %arg2: i32) -> (i32, i32) {
    %c0_i32 = arith.constant 0 : i32
    return %arg1, %arg2 : i32, i32
  }
  func.func @transform_2(%arg0: i32, %arg1: i32, %arg2: i32) -> (i32, i32) {
    %c0_i32 = arith.constant 0 : i32
    return %arg1, %arg2 : i32, i32
  }
  func.func @transform_3(%arg0: i32, %arg1: i32, %arg2: i32) -> (i32, i32) {
    %c0_i32 = arith.constant 0 : i32
    %c0_i32_0 = arith.constant 0 : i32
    return %c0_i32, %arg1 : i32, i32
  }
  func.func @transform_4(%arg0: i32, %arg1: i32, %arg2: i32) -> (i32, i32) {
    %c0_i32 = arith.constant 0 : i32
    return %arg0, %arg1 : i32, i32
  }
}

</mosaic_0001>

<llo_original>
// kernel: tpu_custom_call.1
$region0: #{tpu_custom_call.1}
  #allocation0 [shape = 'u32[]', space=smem, size = 0x4, offset = 0x4, fixed_abs, tag = 'smem constant byte address 0x4 - core index']
  #allocation1 [shape = 'u32[144,128]{1,0:T(1,128)}', space=vmem, size = 0x12000, scoped, tag = 'internal scratch']
  %s0 = inlined_call_operand.hbm [shape: bf16[16,128], index: 0, kind: input, shape index: {}]
  %s1 = inlined_call_operand.hbm [shape: bf16[128,128], index: 1, kind: input, shape index: {}]
  %s2 = inlined_call_operand.hbm [shape: bf16[128,128], index: 2, kind: input, shape index: {}]
  %s3 = inlined_call_operand.vmem [shape: f32[1,128], index: 3, kind: input, shape index: {}]
  %s4 = inlined_call_operand.hbm [shape: f32[16,128], index: 4, kind: output, shape index: {}]
  %s5 = sld [smem:[#allocation0]]
  $region46: #{tpu_custom_call.1} parent=0
    _
  %s7 = ssub.s32 1, %s5
  %s8 = scalar_select 0, %s7, %s5
  $region1: #{tpu_custom_call.1} parent=0
    #allocation2 [shape = 'u8[4096]{0}', space=vmem, size = 0x1000, scoped, tag = 'input window, operand 0, single buffered']
    #allocation3 [shape = 's32[1]{0}', space=sflag, size = 0x4, scoped, tag = 'scoped memory for tpu_custom_call.1']
    #allocation4 [shape = 's32[1]{0}', space=sflag, size = 0x4, scoped, tag = 'scoped memory for tpu_custom_call.1']
    #allocation5 [shape = 'u8[32768]{0}', space=vmem, size = 0x8000, scoped, tag = 'input window, operand 1, single buffered']
    #allocation6 [shape = 's32[1]{0}', space=sflag, size = 0x4, scoped, tag = 'scoped memory for tpu_custom_call.1']
    #allocation7 [shape = 'u8[32768]{0}', space=vmem, size = 0x8000, scoped, tag = 'input window, operand 2, single buffered']
    #allocation8 [shape = 'u8[8192]{0}', space=vmem, size = 0x2000, scoped, tag = 'output window, operand 0, single buffered']
    %9 = vsyncpa [#allocation3], 0
    %10 = vsyncpa [#allocation6], 0
    %11 = vsyncpa [#allocation4], 0
    // Predicated region
    $region2: #{tpu_custom_call.1} parent=1 // pred_check
      _
    $region3: #{tpu_custom_call.1} parent=1 // pred_check_branch
      %13 = sbr.rel (0) target = $region5
    $region4: #{tpu_custom_call.1} parent=1 // pred_region
      %s15 = ssub.s32 128, 128
      %16 = vsyncadd [#allocation3], %s15
      %s17 = sshll.u32 [#allocation2], 4
      %s18 = int_to_ptr.vmem [resolvable:$true] %s17
      %23 = dma.hbm_to_vmem [thread:$0]  %s0, 128, %s18, [#allocation3], 64, 64, 4
    $region5: #{tpu_custom_call.1} parent=1 // pred_fallthru
      _
    // Predicated region
    $region6: #{tpu_custom_call.1} parent=1 // pred_check
      _
    $region7: #{tpu_custom_call.1} parent=1 // pred_check_branch
      %25 = sbr.rel (0) target = $region9
    $region8: #{tpu_custom_call.1} parent=1 // pred_region
      %s27 = ssub.s32 1024, 1024
      %28 = vsyncadd [#allocation6], %s27
      %s29 = sshll.u32 [#allocation5], 4
      %s30 = int_to_ptr.vmem [resolvable:$true] %s29
      %35 = dma.hbm_to_vmem [thread:$0]  %s1, 1024, %s30, [#allocation6], 64, 64, 4
    $region9: #{tpu_custom_call.1} parent=1 // pred_fallthru
      _
    // Predicated region
    $region10: #{tpu_custom_call.1} parent=1 // pred_check
      _
    $region11: #{tpu_custom_call.1} parent=1 // pred_check_branch
      %37 = sbr.rel (0) target = $region13
    $region12: #{tpu_custom_call.1} parent=1 // pred_region
      %s39 = ssub.s32 1024, 1024
      %40 = vsyncadd [#allocation6], %s39
      %s41 = sshll.u32 [#allocation7], 4
      %s42 = int_to_ptr.vmem [resolvable:$true] %s41
      %47 = dma.hbm_to_vmem [thread:$0]  %s2, 1024, %s42, [#allocation6], 64, 64, 4
    $region13: #{tpu_custom_call.1} parent=1 // pred_fallthru
      _
    // Predicated region
    $region14: #{tpu_custom_call.1} parent=1 // pred_check
      _
    $region15: #{tpu_custom_call.1} parent=1 // pred_check_branch
      %49 = sbr.rel (0) target = $region17
    $region16: #{tpu_custom_call.1} parent=1 // pred_region
      _
    $region17: #{tpu_custom_call.1} parent=1 // pred_fallthru
      _
    // Predicated region
    $region18: #{tpu_custom_call.1} parent=1 // pred_check
      _
    $region19: #{tpu_custom_call.1} parent=1 // pred_check_branch
      %51 = sbr.rel (0) target = $region21
    $region20: #{tpu_custom_call.1} parent=1 // pred_region
      %52 = dma.done [#allocation3], 128
    $region21: #{tpu_custom_call.1} parent=1 // pred_fallthru
      _
    // Predicated region
    $region22: #{tpu_custom_call.1} parent=1 // pred_check
      _
    $region23: #{tpu_custom_call.1} parent=1 // pred_check_branch
      %54 = sbr.rel (0) target = $region25
    $region24: #{tpu_custom_call.1} parent=1 // pred_region
      %55 = dma.done [#allocation6], 1024
    $region25: #{tpu_custom_call.1} parent=1 // pred_fallthru
      _
    // Predicated region
    $region26: #{tpu_custom_call.1} parent=1 // pred_check
      _
    $region27: #{tpu_custom_call.1} parent=1 // pred_check_branch
      %57 = sbr.rel (0) target = $region29
    $region28: #{tpu_custom_call.1} parent=1 // pred_region
      %58 = dma.done [#allocation6], 1024
    $region29: #{tpu_custom_call.1} parent=1 // pred_fallthru
      _
    %p60 = scmp.eq.s32.totalorder 0, 0
    // Predicated region
    $region30: #{tpu_custom_call.1} parent=1 // pred_check
      %p61 = pneg %p60
    $region31: #{tpu_custom_call.1} parent=1 // pred_check_branch
      %63 = sbr.rel (%p61) target = $region33
    $region32: #{tpu_custom_call.1} parent=1 // pred_region
      %64 = vst [vmem:[#allocation8] sm:$0xff] 0.0
      %65 = vst [vmem:[#allocation8 + $0x8] sm:$0xff] 0.0
    $region33: #{tpu_custom_call.1} parent=1 // pred_fallthru
      _
    %v66 = vld [vmem:[#allocation5] sm:$0xf]
    %v67 = vld [vmem:[#allocation5 + $0x4] sm:$0xf]
    %v68 = vld [vmem:[#allocation5 + $0x8] sm:$0xf]
    %v69 = vld [vmem:[#allocation5 + $0xc] sm:$0xf]
    %v70 = vld [vmem:[#allocation5 + $0x10] sm:$0xf]
    %v71 = vld [vmem:[#allocation5 + $0x14] sm:$0xf]
    %v72 = vld [vmem:[#allocation5 + $0x18] sm:$0xf]
    %v73 = vld [vmem:[#allocation5 + $0x1c] sm:$0xf]
    %v74 = vld [vmem:[#allocation5 + $0x20] sm:$0xf]
    %v75 = vld [vmem:[#allocation5 + $0x24] sm:$0xf]
    %v76 = vld [vmem:[#allocation5 + $0x28] sm:$0xf]
    %v77 = vld [vmem:[#allocation5 + $0x2c] sm:$0xf]
    %v78 = vld [vmem:[#allocation5 + $0x30] sm:$0xf]
    %v79 = vld [vmem:[#allocation5 + $0x34] sm:$0xf]
    %v80 = vld [vmem:[#allocation5 + $0x38] sm:$0xf]
    %v81 = vld [vmem:[#allocation5 + $0x3c] sm:$0xf]
    %v82 = vunpack.c.l.bf16 %v66
    %v83 = vunpack.c.l.bf16 %v67
    %v84 = vunpack.c.l.bf16 %v68
    %v85 = vunpack.c.l.bf16 %v69
    %v86 = vunpack.c.l.bf16 %v70
    %v87 = vunpack.c.l.bf16 %v71
    %v88 = vunpack.c.l.bf16 %v72
    %v89 = vunpack.c.l.bf16 %v73
    %v90 = vunpack.c.l.bf16 %v74
    %v91 = vunpack.c.l.bf16 %v75
    %v92 = vunpack.c.l.bf16 %v76
    %v93 = vunpack.c.l.bf16 %v77
    %v94 = vunpack.c.l.bf16 %v78
    %v95 = vunpack.c.l.bf16 %v79
    %v96 = vunpack.c.l.bf16 %v80
    %v97 = vunpack.c.l.bf16 %v81
    %v98 = vld [vmem:[#allocation7] sm:$0xf]
    %v99 = vld [vmem:[#allocation7 + $0x4] sm:$0xf]
    %v100 = vld [vmem:[#allocation7 + $0x8] sm:$0xf]
    %v101 = vld [vmem:[#allocation7 + $0xc] sm:$0xf]
    %v102 = vld [vmem:[#allocation7 + $0x10] sm:$0xf]
    %v103 = vld [vmem:[#allocation7 + $0x14] sm:$0xf]
    %v104 = vld [vmem:[#allocation7 + $0x18] sm:$0xf]
    %v105 = vld [vmem:[#allocation7 + $0x1c] sm:$0xf]
    %v106 = vld [vmem:[#allocation7 + $0x20] sm:$0xf]
    %v107 = vld [vmem:[#allocation7 + $0x24] sm:$0xf]
    %v108 = vld [vmem:[#allocation7 + $0x28] sm:$0xf]
    %v109 = vld [vmem:[#allocation7 + $0x2c] sm:$0xf]
    %v110 = vld [vmem:[#allocation7 + $0x30] sm:$0xf]
    %v111 = vld [vmem:[#allocation7 + $0x34] sm:$0xf]
    %v112 = vld [vmem:[#allocation7 + $0x38] sm:$0xf]
    %v113 = vld [vmem:[#allocation7 + $0x3c] sm:$0xf]
    %v114 = vunpack.c.l.bf16 %v98
    %v115 = vunpack.c.l.bf16 %v99
    %v116 = vunpack.c.l.bf16 %v100
    %v117 = vunpack.c.l.bf16 %v101
    %v118 = vunpack.c.l.bf16 %v102
    %v119 = vunpack.c.l.bf16 %v103
    %v120 = vunpack.c.l.bf16 %v104
    %v121 = vunpack.c.l.bf16 %v105
    %v122 = vunpack.c.l.bf16 %v106
    %v123 = vunpack.c.l.bf16 %v107
    %v124 = vunpack.c.l.bf16 %v108
    %v125 = vunpack.c.l.bf16 %v109
    %v126 = vunpack.c.l.bf16 %v110
    %v127 = vunpack.c.l.bf16 %v111
    %v128 = vunpack.c.l.bf16 %v112
    %v129 = vunpack.c.l.bf16 %v113
    %v130 = vtanh.pop %v114
    %v131 = vtanh.pop %v115
    %v132 = vtanh.pop %v116
    %v133 = vtanh.pop %v117
    %v134 = vtanh.pop %v118
    %v135 = vtanh.pop %v119
    %v136 = vtanh.pop %v120
    %v137 = vtanh.pop %v121
    %v138 = vtanh.pop %v122
    %v139 = vtanh.pop %v123
    %v140 = vtanh.pop %v124
    %v141 = vtanh.pop %v125
    %v142 = vtanh.pop %v126
    %v143 = vtanh.pop %v127
    %v144 = vtanh.pop %v128
    %v145 = vtanh.pop %v129
    %v146 = vmul.f32 %v130, 0.01
    %v147 = vmul.f32 %v131, 0.01
    %v148 = vmul.f32 %v132, 0.01
    %v149 = vmul.f32 %v133, 0.01
    %v150 = vmul.f32 %v134, 0.01
    %v151 = vmul.f32 %v135, 0.01
    %v152 = vmul.f32 %v136, 0.01
    %v153 = vmul.f32 %v137, 0.01
    %v154 = vmul.f32 %v138, 0.01
    %v155 = vmul.f32 %v139, 0.01
    %v156 = vmul.f32 %v140, 0.01
    %v157 = vmul.f32 %v141, 0.01
    %v158 = vmul.f32 %v142, 0.01
    %v159 = vmul.f32 %v143, 0.01
    %v160 = vmul.f32 %v144, 0.01
    %v161 = vmul.f32 %v145, 0.01
    %v162 = vadd.f32 %v146, 1.0
    %v163 = vadd.f32 %v147, 1.0
    %v164 = vadd.f32 %v148, 1.0
    %v165 = vadd.f32 %v149, 1.0
    %v166 = vadd.f32 %v150, 1.0
    %v167 = vadd.f32 %v151, 1.0
    %v168 = vadd.f32 %v152, 1.0
    %v169 = vadd.f32 %v153, 1.0
    %v170 = vadd.f32 %v154, 1.0
    %v171 = vadd.f32 %v155, 1.0
    %v172 = vadd.f32 %v156, 1.0
    %v173 = vadd.f32 %v157, 1.0
    %v174 = vadd.f32 %v158, 1.0
    %v175 = vadd.f32 %v159, 1.0
    %v176 = vadd.f32 %v160, 1.0
    %v177 = vadd.f32 %v161, 1.0
    %v178 = vmul.f32 %v82, %v162
    %v179 = vmul.f32 %v83, %v163
    %v180 = vmul.f32 %v84, %v164
    %v181 = vmul.f32 %v85, %v165
    %v182 = vmul.f32 %v86, %v166
    %v183 = vmul.f32 %v87, %v167
    %v184 = vmul.f32 %v88, %v168
    %v185 = vmul.f32 %v89, %v169
    %v186 = vmul.f32 %v90, %v170
    %v187 = vmul.f32 %v91, %v171
    %v188 = vmul.f32 %v92, %v172
    %v189 = vmul.f32 %v93, %v173
    %v190 = vmul.f32 %v94, %v174
    %v191 = vmul.f32 %v95, %v175
    %v192 = vmul.f32 %v96, %v176
    %v193 = vmul.f32 %v97, %v177
    %v194 = vpack.c.bf16 %v179, %v178
    %v195 = vpack.c.bf16 %v181, %v180
    %v196 = vpack.c.bf16 %v183, %v182
    %v197 = vpack.c.bf16 %v185, %v184
    %v198 = vpack.c.bf16 %v187, %v186
    %v199 = vpack.c.bf16 %v189, %v188
    %v200 = vpack.c.bf16 %v191, %v190
    %v201 = vpack.c.bf16 %v193, %v192
    %v202 = vld [vmem:[#allocation8] sm:$0xff]
    %v203 = vld [vmem:[#allocation8 + $0x8] sm:$0xff]
    %v204 = vld [vmem:[#allocation2] sm:$0xf]
    %v205 = vld [vmem:[#allocation2 + $0x4] sm:$0xf]
    %v208 = vunpack.c.l.b16 %v204
    %v209 = vunpack.c.l.b16 %v205
    %v210 = vpack.c.b16 %v209, %v208
    %212 = vmatprep.subr.bf16.mxu0 0
    %213 = vmatpush1.bf16.xpose.msra.mxu0 %v194
    %214 = vmatprep.subr.bf16.mxu0 0
    %215 = vmatpush1.bf16.xpose.msra.mxu0 %v195
    %216 = vmatprep.subr.bf16.mxu0 0
    %217 = vmatpush1.bf16.xpose.msra.mxu0 %v196
    %218 = vmatprep.subr.bf16.mxu0 0
    %219 = vmatpush1.bf16.xpose.msra.mxu0 %v197
    %220 = vmatprep.subr.bf16.mxu0 0
    %221 = vmatpush1.bf16.xpose.msra.mxu0 %v198
    %222 = vmatprep.subr.bf16.mxu0 0
    %223 = vmatpush1.bf16.xpose.msra.mxu0 %v199
    %224 = vmatprep.subr.bf16.mxu0 0
    %225 = vmatpush1.bf16.xpose.msra.mxu0 %v200
    %226 = vmatprep.subr.bf16.mxu0 0
    %227 = vmatpush1.bf16.xpose.msra.mxu0 %v201
    %228 = vmatprep.subr.bf16.mxu0 0
    %229 = vmatpush1.bf16.xpose.msra.mxu0 0
    %230 = vmatprep.subr.bf16.mxu0 0
    %231 = vmatpush1.bf16.xpose.msra.mxu0 0
    %232 = vmatprep.subr.bf16.mxu0 0
    %233 = vmatpush1.bf16.xpose.msra.mxu0 0
    %234 = vmatprep.subr.bf16.mxu0 0
    %235 = vmatpush1.bf16.xpose.msra.mxu0 0
    %236 = vmatprep.subr.bf16.mxu0 0
    %237 = vmatpush1.bf16.xpose.msra.mxu0 0
    %238 = vmatprep.subr.bf16.mxu0 0
    %239 = vmatpush1.bf16.xpose.msra.mxu0 0
    %240 = vmatprep.subr.bf16.mxu0 0
    %241 = vmatpush1.bf16.xpose.msra.mxu0 0
    %242 = vmatprep.subr.bf16.mxu0 0
    %243 = vmatpush1.bf16.xpose.msra.mxu0 0
    %244 = vmatprep.mubr.bf16.mxu0 0
    %245 = vmatmul.mubr.bf16.gmra.mrb[0].mxu0 %v210
    %v246 = vpop.f32.mrb[0].mxu0
    %v247 = vadd.f32 0.0, %v246
    %v248 = vpop.f32.mrb[0].mxu0
    %v249 = vpop.f32.mrb[0].mxu0
    %v250 = vadd.f32 0.0, %v249
    %v251 = vpop.f32.mrb[0].mxu0
    %252 = vdwg.mxu0
    %v253 = vadd.f32 %v202, %v247
    %v254 = vadd.f32 %v203, %v250
    %255 = vst [vmem:[#allocation8] sm:$0xff] %v253
    %256 = vst [vmem:[#allocation8 + $0x8] sm:$0xff] %v254
    // Predicated region
    $region34: #{tpu_custom_call.1} parent=1 // pred_check
      %p257 = pneg %p60
    $region35: #{tpu_custom_call.1} parent=1 // pred_check_branch
      %259 = sbr.rel (%p257) target = $region37
    $region36: #{tpu_custom_call.1} parent=1 // pred_region
      %v260 = vld [vmem:[#allocation8] sm:$0xff]
      %v261 = vld [vmem:[#allocation8 + $0x8] sm:$0xff]
      %v262 = vld [vmem:[%s3] sm:$0x1]
      %v264 = vlaneseq
      %v265 = vshrl.u32 %v264, 7
      %v266 = vsub.s32 0, %v265
      %v267 = vrot.slane %v262, %v266
      %v269 = vadd.f32 %v260, %v267
      %v270 = vadd.f32 %v261, %v267
      %271 = vst [vmem:[#allocation8] sm:$0xff] %v269
      %272 = vst [vmem:[#allocation8 + $0x8] sm:$0xff] %v270
    $region37: #{tpu_custom_call.1} parent=1 // pred_fallthru
      _
    // Predicated region
    $region38: #{tpu_custom_call.1} parent=1 // pred_check
      _
    $region39: #{tpu_custom_call.1} parent=1 // pred_check_branch
      %274 = sbr.rel (0) target = $region41
    $region40: #{tpu_custom_call.1} parent=1 // pred_region
      %s276 = ssub.s32 256, 256
      %277 = vsyncadd [#allocation4], %s276
      %s278 = sshll.u32 [#allocation8], 4
      %s279 = int_to_ptr.vmem [resolvable:$true] %s278
      %284 = dma.vmem_to_hbm [thread:$0]  %s279, 256, %s4, [#allocation4], 128, 128, 8
    $region41: #{tpu_custom_call.1} parent=1 // pred_fallthru
      _
    // Predicated region
    $region42: #{tpu_custom_call.1} parent=1 // pred_check
      _
    $region43: #{tpu_custom_call.1} parent=1 // pred_check_branch
      %286 = sbr.rel (0) target = $region45
    $region44: #{tpu_custom_call.1} parent=1 // pred_region
      %287 = dma.done [#allocation4], 256
    $region45: #{tpu_custom_call.1} parent=1 // pred_fallthru
      _
    %288 = vsyncpa [#allocation3], 1
    %289 = vsyncpa [#allocation6], 1
    %290 = vsyncpa [#allocation4], 1

</llo_original>
